<compile_context>
chip_gen: v6e
topology: v6e:2x2x1
jax: 0.10.0
libtpu: 0.0.40
codegen_flags: <defaults>
</compile_context>

<pallas_src>
import functools

import jax
import jax.numpy as jnp
from jax.experimental import pallas as pl
from jax.experimental.pallas import tpu as pltpu

_VMEM = pl.BlockSpec(memory_space=pltpu.MemorySpace.VMEM)


# ----------------------------- single-net path ------------------------------

def _net_kernel(x_ref, w1_ref, b1_ref, w2_ref, b2_ref, o_ref):
    """Fused Linear -> ReLU -> Linear -> Softmax for one (B, obs) tile."""
    h = jnp.dot(x_ref[...], w1_ref[...], preferred_element_type=jnp.float32)
    h = jnp.maximum(h + b1_ref[...], 0.0)

    logits = jnp.dot(h, w2_ref[...], preferred_element_type=jnp.float32)
    logits = logits + b2_ref[...]

    m = jnp.max(logits, axis=-1, keepdims=True)
    e = jnp.exp(logits - m)
    inv = pl.reciprocal(jnp.sum(e, axis=-1, keepdims=True), approx=False)
    o_ref[...] = e * inv


@jax.jit
def net_forward(x, params):
    """Single-net forward. x: (B, obs) f32 -> (B, action_size) f32."""
    w1, b1, w2, b2 = params
    B = x.shape[0]
    act = w2.shape[1]
    return pl.pallas_call(
        _net_kernel,
        out_shape=jax.ShapeDtypeStruct((B, act), jnp.float32),
        in_specs=[_VMEM] * 5,
        out_specs=_VMEM,
    )(x, w1, b1, w2, b2)


# ----------------------------- GA population path ---------------------------

def _population_kernel(x_ref, w1_ref, b1_ref, w2_ref, b2_ref, o_ref, *, act):
    """Whole-population forward, fully fused and resident in VMEM.

    x:  (B, obs)
    w1: (obs, P*hid)   packed wide       b1: (1, P*hid)
    w2: (P*hid, act*P) block-diagonal    b2: (1, act*P)   (column = a*P + p)
    o:  (B, act*P) softmax probs, column order [a*P + p].
    """
    # Layer 1: one lane-dense matmul over all members.
    h = jnp.dot(x_ref[...], w1_ref[...], preferred_element_type=jnp.float32)
    h = jnp.maximum(h + b1_ref[...], 0.0)

    # Layer 2: one block-diagonal matmul -> (B, act*P) logit slab.
    logits = jnp.dot(h, w2_ref[...], preferred_element_type=jnp.float32)
    logits = logits + b2_ref[...]

    # Per-member softmax. Member p's logits live at columns {a*P + p}, so the
    # per-member max / sum are elementwise ops across `act` contiguous (B, P)
    # lane chunks -- no cross-lane reductions, no masking.
    P = logits.shape[-1] // act
    chunks = [logits[:, a * P:(a + 1) * P] for a in range(act)]

    m = chunks[0]
    for c in chunks[1:]:
        m = jnp.maximum(m, c)

    es = [jnp.exp(c - m) for c in chunks]
    s = es[0]
    for e in es[1:]:
        s = s + e
    inv = pl.reciprocal(s, approx=False)

    for a in range(act):
        o_ref[:, a * P:(a + 1) * P] = es[a] * inv


@jax.jit
def net_forward_population(x, params):
    """Evaluate a whole GA population in one ungridded pallas_call.

    x: (B, obs) observations shared by all members.
    params: per-member stacked weights:
        w1 (P, obs, hid), b1 (P, 1, hid), w2 (P, hid, act), b2 (P, 1, act)
    Returns (P, B, act) softmax action probabilities.
    """
    w1, b1, w2, b2 = params
    P, obs, hid = w1.shape
    act = w2.shape[2]
    B = x.shape[0]

    # --- wrapper-side packing (layout plumbing, cheap XLA ops) ---
    # Layer 1: wide weights, column index = p*hid + h.
    w1_wide = jnp.transpose(w1, (1, 0, 2)).reshape(obs, P * hid)
    b1_wide = b1.reshape(1, P * hid)
    # Layer 2: block-diagonal weights, row = p*hid + h, column = a*P + p.
    eye = jnp.eye(P, dtype=w2.dtype)
    w2_bd = jnp.einsum('pha,pq->phaq', w2, eye).reshape(P * hid, act * P)
    b2_wide = jnp.transpose(b2.reshape(P, act), (1, 0)).reshape(1, act * P)

    out_wide = pl.pallas_call(
        functools.partial(_population_kernel, act=act),
        out_shape=jax.ShapeDtypeStruct((B, act * P), jnp.float32),
        in_specs=[_VMEM] * 5,
        out_specs=_VMEM,
    )(x, w1_wide, b1_wide, w2_bd, b2_wide)

    # (B, act*P) -> (B, act, P) -> (P, B, act)
    return jnp.transpose(out_wide.reshape(B, act, P), (2, 0, 1))


# ----------------------------- init & reference -----------------------------

def init_params(key, obs_size, hidden, action_size):
    """torch.nn.Linear-style init (U[-1/sqrt(fan_in), 1/sqrt(fan_in)]).
    Biases stored as (1, out) once so nothing is reshaped per call."""
    k1, k2, k3, k4 = jax.random.split(key, 4)
    lim1 = 1.0 / jnp.sqrt(jnp.float32(obs_size))
    lim2 = 1.0 / jnp.sqrt(jnp.float32(hidden))
    w1 = jax.random.uniform(k1, (obs_size, hidden), jnp.float32, -lim1, lim1)
    b1 = jax.random.uniform(k2, (1, hidden), jnp.float32, -lim1, lim1)
    w2 = jax.random.uniform(k3, (hidden, action_size), jnp.float32, -lim2, lim2)
    b2 = jax.random.uniform(k4, (1, action_size), jnp.float32, -lim2, lim2)
    return w1, b1, w2, b2


def _ref_forward(x, w1, b1, w2, b2):
    h = jnp.maximum(x @ w1 + b1, 0.0)
    return jax.nn.softmax(h @ w2 + b2, axis=-1)


if __name__ == "__main__":
    # CartPole-like sizes: obs_size=4, action_size=2, hidden=32.
    # batch=8 fills all f32 vreg sublanes (perf review item).
    obs_size, hidden, action_size, batch, pop = 4, 32, 2, 8, 8

    key = jax.random.PRNGKey(0)
    kx, kp, kpop = jax.random.split(key, 3)
    x = jax.random.normal(kx, (batch, obs_size), jnp.float32)

    # --- single net (ungridded, unpadded, one pallas_call) ---
    params = init_params(kp, obs_size, hidden, action_size)
    out = jax.block_until_ready(net_forward(x, params))
    ref = _ref_forward(x, *params)
    assert out.shape == (batch, action_size)
    assert jnp.allclose(out, ref, atol=1e-5, rtol=1e-5)
    assert jnp.allclose(jnp.sum(out, axis=-1), 1.0, atol=1e-5)

    # --- whole GA population, one ungridded fused pallas_call ---
    member_params = [init_params(k, obs_size, hidden, action_size)
                     for k in jax.random.split(kpop, pop)]
    pop_params = tuple(jnp.stack(p) for p in zip(*member_params))
    pout = jax.block_until_ready(net_forward_population(x, pop_params))
    pref = jax.vmap(
        lambda w1, b1, w2, b2: _ref_forward(x, w1, b1, w2, b2))(*pop_params)
    assert pout.shape == (pop, batch, action_size)
    assert jnp.allclose(pout, pref, atol=1e-5, rtol=1e-5)
    assert jnp.allclose(jnp.sum(pout, axis=-1), 1.0, atol=1e-5)

    print("KERNEL_OK")
</pallas_src>

<mosaic_0001>
module attributes {stable_mosaic.version = 11 : i64} {
  func.func @_net_kernel(%arg0: memref<8x4xf32, #tpu.memory_space<vmem>>, %arg1: memref<4x32xf32, #tpu.memory_space<vmem>>, %arg2: memref<1x32xf32, #tpu.memory_space<vmem>>, %arg3: memref<32x2xf32, #tpu.memory_space<vmem>>, %arg4: memref<1x2xf32, #tpu.memory_space<vmem>>, %arg5: memref<8x2xf32, #tpu.memory_space<vmem>>) attributes {dimension_semantics = [], scalar_prefetch = 0 : i64, scratch_operands = 0 : i64, tpu.core_type = #tpu.core_type<tc>} {
    %c0 = arith.constant 0 : index
    %c0_0 = arith.constant 0 : index
    %0 = vector.load %arg0[%c0, %c0_0] : memref<8x4xf32, #tpu.memory_space<vmem>>, vector<8x4xf32>
    %c0_1 = arith.constant 0 : index
    %c0_2 = arith.constant 0 : index
    %1 = vector.load %arg1[%c0_1, %c0_2] : memref<4x32xf32, #tpu.memory_space<vmem>>, vector<4x32xf32>
    %cst = arith.constant dense<0.000000e+00> : vector<8x32xf32>
    %2 = tpu.matmul %0, %1, %cst {dimension_numbers = #tpu.dot_dimension_numbers<[1], [0], [0], [1], [0, 0, 1, 1], [], []>} : vector<8x4xf32>, vector<4x32xf32>, vector<8x32xf32> -> vector<8x32xf32>
    %c0_3 = arith.constant 0 : index
    %c0_4 = arith.constant 0 : index
    %3 = vector.load %arg2[%c0_3, %c0_4] : memref<1x32xf32, #tpu.memory_space<vmem>>, vector<1x32xf32>
    %4 = vector.broadcast %3 : vector<1x32xf32> to vector<8x32xf32>
    %5 = arith.addf %2, %4 : vector<8x32xf32>
    %cst_5 = arith.constant 0.000000e+00 : f32
    %6 = vector.broadcast %cst_5 : f32 to vector<8x32xf32>
    %7 = arith.maximumf %5, %6 : vector<8x32xf32>
    %c0_6 = arith.constant 0 : index
    %c0_7 = arith.constant 0 : index
    %8 = vector.load %arg3[%c0_6, %c0_7] : memref<32x2xf32, #tpu.memory_space<vmem>>, vector<32x2xf32>
    %cst_8 = arith.constant dense<0.000000e+00> : vector<8x2xf32>
    %9 = tpu.matmul %7, %8, %cst_8 {dimension_numbers = #tpu.dot_dimension_numbers<[1], [0], [0], [1], [0, 0, 1, 1], [], []>} : vector<8x32xf32>, vector<32x2xf32>, vector<8x2xf32> -> vector<8x2xf32>
    %c0_9 = arith.constant 0 : index
    %c0_10 = arith.constant 0 : index
    %10 = vector.load %arg4[%c0_9, %c0_10] : memref<1x2xf32, #tpu.memory_space<vmem>>, vector<1x2xf32>
    %11 = vector.broadcast %10 : vector<1x2xf32> to vector<8x2xf32>
    %12 = arith.addf %9, %11 : vector<8x2xf32>
    %cst_11 = arith.constant dense<0xFF800000> : vector<8xf32>
    %13 = vector.multi_reduction <maximumf>, %12, %cst_11 [1] : vector<8x2xf32> to vector<8xf32>
    %14 = vector.shape_cast %13 : vector<8xf32> to vector<8x1xf32>
    %15 = vector.broadcast %14 : vector<8x1xf32> to vector<8x2xf32>
    %16 = arith.subf %12, %15 : vector<8x2xf32>
    %17 = math.exp %16 : vector<8x2xf32>
    %cst_12 = arith.constant dense<0.000000e+00> : vector<8xf32>
    %18 = vector.multi_reduction <add>, %17, %cst_12 [1] : vector<8x2xf32> to vector<8xf32>
    %19 = vector.shape_cast %18 : vector<8xf32> to vector<8x1xf32>
    %20 = tpu.reciprocal %19 : vector<8x1xf32> -> vector<8x1xf32>
    %21 = vector.broadcast %20 : vector<8x1xf32> to vector<8x2xf32>
    %22 = arith.mulf %17, %21 : vector<8x2xf32>
    %c0_13 = arith.constant 0 : index
    %c0_14 = arith.constant 0 : index
    %23 = vector.load %arg5[%c0_13, %c0_14] : memref<8x2xf32, #tpu.memory_space<vmem>>, vector<8x2xf32>
    tpu.vector_store %arg5[%c0_13, %c0_14], %22 {strides = array<i32>} : memref<8x2xf32, #tpu.memory_space<vmem>>, vector<8x2xf32>,
    return
  }
}

</mosaic_0001>

<llo_original>
// kernel: net_forward.1
$region0: #{net_forward.1}
  #allocation0 [shape = 'u32[]', space=smem, size = 0x4, offset = 0x4, fixed_abs, tag = 'smem constant byte address 0x4 - core index']
  #allocation1 [shape = 'u32[144,128]{1,0:T(1,128)}', space=vmem, size = 0x12000, scoped, tag = 'internal scratch']
  %s0 = inlined_call_operand.vmem [shape: f32[8,4], index: 0, kind: input, shape index: {}]
  %s1 = inlined_call_operand.vmem [shape: f32[4,32], index: 1, kind: input, shape index: {}]
  %s2 = inlined_call_operand.vmem [shape: f32[1,32], index: 2, kind: input, shape index: {}]
  %s3 = inlined_call_operand.vmem [shape: f32[32,2], index: 3, kind: input, shape index: {}]
  %s4 = inlined_call_operand.vmem [shape: f32[1,2], index: 4, kind: input, shape index: {}]
  %s5 = inlined_call_operand.vmem [shape: f32[8,2], index: 5, kind: output, shape index: {}]
  %s6 = sld [smem:[#allocation0]]
  $region30: #{net_forward.1} parent=0
    _
  %s8 = ssub.s32 1, %s6
  %s9 = scalar_select 0, %s8, %s6
  // Predicated region
  $region2: #{net_forward.1} parent=0 // pred_check
    _
  $region3: #{net_forward.1} parent=0 // pred_check_branch
    %11 = sbr.rel (0) target = $region5
  $region4: #{net_forward.1} parent=0 // pred_region
    _
  $region5: #{net_forward.1} parent=0 // pred_fallthru
    _
  // Predicated region
  $region6: #{net_forward.1} parent=0 // pred_check
    _
  $region7: #{net_forward.1} parent=0 // pred_check_branch
    %13 = sbr.rel (0) target = $region9
  $region8: #{net_forward.1} parent=0 // pred_region
    _
  $region9: #{net_forward.1} parent=0 // pred_fallthru
    _
  // Predicated region
  $region10: #{net_forward.1} parent=0 // pred_check
    _
  $region11: #{net_forward.1} parent=0 // pred_check_branch
    %15 = sbr.rel (0) target = $region13
  $region12: #{net_forward.1} parent=0 // pred_region
    _
  $region13: #{net_forward.1} parent=0 // pred_fallthru
    _
  // Predicated region
  $region14: #{net_forward.1} parent=0 // pred_check
    _
  $region15: #{net_forward.1} parent=0 // pred_check_branch
    %17 = sbr.rel (0) target = $region17
  $region16: #{net_forward.1} parent=0 // pred_region
    _
  $region17: #{net_forward.1} parent=0 // pred_fallthru
    _
  // Predicated region
  $region18: #{net_forward.1} parent=0 // pred_check
    _
  $region19: #{net_forward.1} parent=0 // pred_check_branch
    %19 = sbr.rel (0) target = $region21
  $region20: #{net_forward.1} parent=0 // pred_region
    _
  $region21: #{net_forward.1} parent=0 // pred_fallthru
    _
  %v20 = vld [vmem:[%s0] sm:$0xff]
  %v21 = vld [vmem:[%s1] sm:$0xf]
  %v22 = vld [vmem:[%s2] sm:$0x1]
  %v24 = vlaneseq
  %v25 = vshrl.u32 %v24, 7
  %v26 = vsub.s32 0, %v25
  %v27 = vrot.slane %v22, %v26
  %vm29 = vcmask 31744
  %v31 = vsel %vm29, %v20, 0
  %vm33 = vcmask 1043456
  %v35 = vsel %vm33, %v21, 0
  %37 = vmatprep.subr.mxu0 0.0
  %38 = vmatpush1.msra.mxu0 0.0
  %39 = vmatprep.subr.mxu0 0.0
  %40 = vmatpush1.msra.mxu0 0.0
  %41 = vmatprep.subr.mxu0 0.0
  %42 = vmatpush1.msra.mxu0 0.0
  %43 = vmatprep.subr.mxu0 0.0
  %44 = vmatpush1.msra.mxu0 0.0
  %45 = vmatprep.subr.mxu0 0.0
  %46 = vmatpush1.msra.mxu0 0.0
  %47 = vmatprep.subr.mxu0 0.0
  %48 = vmatpush1.msra.mxu0 0.0
  %49 = vmatprep.subr.mxu0 0.0
  %50 = vmatpush1.msra.mxu0 0.0
  %51 = vmatprep.subr.mxu0 0.0
  %52 = vmatpush1.msra.mxu0 0.0
  %53 = vmatprep.subr.mxu0 0.0
  %54 = vmatpush1.msra.mxu0 0.0
  %55 = vmatprep.subr.mxu0 0.0
  %56 = vmatpush1.msra.mxu0 0.0
  %57 = vmatprep.subr.mxu0 0.0
  %58 = vmatpush1.msra.mxu0 0.0
  %59 = vmatprep.subr.mxu0 0.0
  %60 = vmatpush1.msra.mxu0 0.0
  %61 = vmatprep.subr.mxu0 0.0
  %62 = vmatpush1.msra.mxu0 0.0
  %63 = vmatprep.subr.mxu0 0.0
  %64 = vmatpush1.msra.mxu0 0.0
  %65 = vmatprep.subr.mxu0 0.0
  %66 = vmatpush1.msra.mxu0 0.0
  %67 = vmatprep.subr.mxu0 0.0
  %68 = vmatpush1.msra.mxu0 %v35
  %69 = vmatprep.subr.mxu0 0.0
  %70 = vmatpush2.msra.mxu0 0.0
  %71 = vmatprep.subr.mxu0 0.0
  %72 = vmatpush2.msra.mxu0 0.0
  %73 = vmatprep.subr.mxu0 0.0
  %74 = vmatpush2.msra.mxu0 0.0
  %75 = vmatprep.subr.mxu0 0.0
  %76 = vmatpush2.msra.mxu0 0.0
  %77 = vmatprep.subr.mxu0 0.0
  %78 = vmatpush2.msra.mxu0 0.0
  %79 = vmatprep.subr.mxu0 0.0
  %80 = vmatpush2.msra.mxu0 0.0
  %81 = vmatprep.subr.mxu0 0.0
  %82 = vmatpush2.msra.mxu0 0.0
  %83 = vmatprep.subr.mxu0 0.0
  %84 = vmatpush2.msra.mxu0 0.0
  %85 = vmatprep.subr.mxu0 0.0
  %86 = vmatpush2.msra.mxu0 0.0
  %87 = vmatprep.subr.mxu0 0.0
  %88 = vmatpush2.msra.mxu0 0.0
  %89 = vmatprep.subr.mxu0 0.0
  %90 = vmatpush2.msra.mxu0 0.0
  %91 = vmatprep.subr.mxu0 0.0
  %92 = vmatpush2.msra.mxu0 0.0
  %93 = vmatprep.subr.mxu0 0.0
  %94 = vmatpush2.msra.mxu0 0.0
  %95 = vmatprep.subr.mxu0 0.0
  %96 = vmatpush2.msra.mxu0 0.0
  %97 = vmatprep.subr.mxu0 0.0
  %98 = vmatpush2.msra.mxu0 0.0
  %99 = vmatprep.subr.mxu0 0.0
  %100 = vmatpush2.msra.mxu0 0.0
  %101 = vmatprep.mubr.f32.mxu0 0.0
  %102 = vmatmul.mubr.f32.gmra.mxu0 %v31
  %v103 = vpop.f32.mrf.mxu0
  %v104 = vadd.f32 %v27, %v103
  %v105 = vpop.f32.mrf.mxu0
  %106 = vdwg.mxu0
  %v107 = vmax.f32 %v104, 0.0
  %v108 = vld [vmem:[%s3] sm:$0xff]
  %v109 = vld [vmem:[%s3 + $0x8] sm:$0xff]
  %v110 = vld [vmem:[%s3 + $0x10] sm:$0xff]
  %v111 = vld [vmem:[%s3 + $0x18] sm:$0xff]
  %v112 = vld [vmem:[%s4] sm:$0x1]
  %v114 = vlaneseq
  %v115 = vshrl.u32 %v114, 7
  %v116 = vsub.s32 0, %v115
  %v117 = vrot.slane %v112, %v116
  %vm119 = vcmask 261120
  %v121 = vsel %vm119, %v107, 0
  %123 = vmatprep.subr.mxu0 0.0
  %124 = vmatpush1.msra.mxu0 0.0
  %125 = vmatprep.subr.mxu0 0.0
  %126 = vmatpush1.msra.mxu0 0.0
  %127 = vmatprep.subr.mxu0 0.0
  %128 = vmatpush1.msra.mxu0 0.0
  %129 = vmatprep.subr.mxu0 0.0
  %130 = vmatpush1.msra.mxu0 0.0
  %131 = vmatprep.subr.mxu0 0.0
  %132 = vmatpush1.msra.mxu0 0.0
  %133 = vmatprep.subr.mxu0 0.0
  %134 = vmatpush1.msra.mxu0 0.0
  %135 = vmatprep.subr.mxu0 0.0
  %136 = vmatpush1.msra.mxu0 0.0
  %137 = vmatprep.subr.mxu0 0.0
  %138 = vmatpush1.msra.mxu0 0.0
  %139 = vmatprep.subr.mxu0 0.0
  %140 = vmatpush1.msra.mxu0 0.0
  %141 = vmatprep.subr.mxu0 0.0
  %142 = vmatpush1.msra.mxu0 0.0
  %143 = vmatprep.subr.mxu0 0.0
  %144 = vmatpush1.msra.mxu0 0.0
  %145 = vmatprep.subr.mxu0 0.0
  %146 = vmatpush1.msra.mxu0 0.0
  %147 = vmatprep.subr.mxu0 0.0
  %148 = vmatpush1.msra.mxu0 %v111
  %149 = vmatprep.subr.mxu0 0.0
  %150 = vmatpush1.msra.mxu0 %v110
  %151 = vmatprep.subr.mxu0 0.0
  %152 = vmatpush1.msra.mxu0 %v109
  %153 = vmatprep.subr.mxu0 0.0
  %154 = vmatpush1.msra.mxu0 %v108
  %155 = vmatprep.subr.mxu0 0.0
  %156 = vmatpush2.msra.mxu0 0.0
  %157 = vmatprep.subr.mxu0 0.0
  %158 = vmatpush2.msra.mxu0 0.0
  %159 = vmatprep.subr.mxu0 0.0
  %160 = vmatpush2.msra.mxu0 0.0
  %161 = vmatprep.subr.mxu0 0.0
  %162 = vmatpush2.msra.mxu0 0.0
  %163 = vmatprep.subr.mxu0 0.0
  %164 = vmatpush2.msra.mxu0 0.0
  %165 = vmatprep.subr.mxu0 0.0
  %166 = vmatpush2.msra.mxu0 0.0
  %167 = vmatprep.subr.mxu0 0.0
  %168 = vmatpush2.msra.mxu0 0.0
  %169 = vmatprep.subr.mxu0 0.0
  %170 = vmatpush2.msra.mxu0 0.0
  %171 = vmatprep.subr.mxu0 0.0
  %172 = vmatpush2.msra.mxu0 0.0
  %173 = vmatprep.subr.mxu0 0.0
  %174 = vmatpush2.msra.mxu0 0.0
  %175 = vmatprep.subr.mxu0 0.0
  %176 = vmatpush2.msra.mxu0 0.0
  %177 = vmatprep.subr.mxu0 0.0
  %178 = vmatpush2.msra.mxu0 0.0
  %179 = vmatprep.subr.mxu0 0.0
  %180 = vmatpush2.msra.mxu0 0.0
  %181 = vmatprep.subr.mxu0 0.0
  %182 = vmatpush2.msra.mxu0 0.0
  %183 = vmatprep.subr.mxu0 0.0
  %184 = vmatpush2.msra.mxu0 0.0
  %185 = vmatprep.subr.mxu0 0.0
  %186 = vmatpush2.msra.mxu0 0.0
  %187 = vmatprep.mubr.f32.mxu0 0.0
  %188 = vmatmul.mubr.f32.gmra.mxu0 %v121
  %v189 = vpop.f32.mrf.mxu0
  %v190 = vadd.f32 %v117, %v189
  %v191 = vpop.f32.mrf.mxu0
  %192 = vdwg.mxu0
  %vm193 = vcmask 15360
  %v194 = vsel %vm193, %v190, -inf
  %195 = vmax.xlane.f32.xlu0 %v194
  %v196 = vpop.xlane.xlu0 %195
  %v197 = vsub.f32 %v190, %v196
  %v198 = vmul.f32 %v197, 1.442695
  %v199 = vpow.pop %v198
  %v200 = vsel %vm193, %v199, 0.0
  %201 = vadd.xlane.f32.xlu0 %v200
  %v202 = vpop.xlane.xlu0 %201
  %v203 = vrcp.pop %v202
  %v204 = vmul.f32 %v199, %v203
  %205 = vst.msk [vmem:[%s5] sm:$0xff] %vm193, %v204
  // Predicated region
  $region22: #{net_forward.1} parent=0 // pred_check
    _
  $region23: #{net_forward.1} parent=0 // pred_check_branch
    %207 = sbr.rel (0) target = $region25
  $region24: #{net_forward.1} parent=0 // pred_region
    _
  $region25: #{net_forward.1} parent=0 // pred_fallthru
    _
  // Predicated region
  $region26: #{net_forward.1} parent=0 // pred_check
    _
  $region27: #{net_forward.1} parent=0 // pred_check_branch
    %209 = sbr.rel (0) target = $region29
  $region28: #{net_forward.1} parent=0 // pred_region
    _
  $region29: #{net_forward.1} parent=0 // pred_fallthru
    _

</llo_original>
